<compile_context>
chip_gen: v7x
topology: tpu7x:2x2x1
jax: 0.10.0
libtpu: 0.0.40
codegen_flags: <defaults>
</compile_context>

<pallas_src>
import functools

import jax
import jax.numpy as jnp
from jax.experimental import pallas as pl
from jax.experimental.pallas import tpu as pltpu


def _round_up(x, m):
    return (x + m - 1) // m * m


def _bigram_kernel(pair_ref, emb_ref, *out_refs, bt_total, v_real,
                   emit_logits, compute_loss, has_padding):
    # pair_ref : (TILE_BT, 1|2) int32 VMEM   [:, 0] = idx, [:, 1] = targets
    # emb_ref  : (VR, VC)       f32   VMEM   resident; column v_real = row logsumexp
    # out_refs : (logits_ref?, part_ref?) depending on static flags
    #   logits_ref : (TILE_BT, VC) f32  lane-dense logits tile
    #   part_ref   : (8, 128)      f32  per-tile partial CE sum at [0, 0]
    i = pl.program_id(0)
    tile_bt = pair_ref.shape[0]
    vc = emb_ref.shape[1]

    if emit_logits and compute_loss:
        logits_ref, part_ref = out_refs
    elif emit_logits:
        (logits_ref,) = out_refs
        part_ref = None
    else:
        (part_ref,) = out_refs
        logits_ref = None

    pair = pair_ref[...]
    ids = pair[:, 0:1]                                             # (TILE_BT, 1)

    col = jax.lax.broadcasted_iota(jnp.int32, (tile_bt, vc), 1)    # (TILE_BT, VC)

    # Embedding gather as one-hot @ table (MXU). Column `v_real` of the augmented
    # table holds the precomputed per-row logsumexp, so this single matmul also
    # produces the softmax normalizer for every position. f32 kept for exactness.
    one_hot = (col == ids).astype(jnp.float32)                     # (TILE_BT, VC)
    logits = jnp.dot(one_hot, emb_ref[...],
                     preferred_element_type=jnp.float32)           # (TILE_BT, VC)

    if emit_logits:
        logits_ref[...] = logits                                   # full-width vst

    if compute_loss:
        tgt = pair[:, 1:2]                                         # (TILE_BT, 1)
        # per-position CE = lse - target_logit
        lse = logits[:, v_real:v_real + 1]                         # lane slice
        tgt_logit = jnp.sum(logits * (col == tgt).astype(jnp.float32),
                            axis=-1, keepdims=True)                # (TILE_BT, 1)
        per_pos = lse - tgt_logit                                  # (TILE_BT, 1)

        def write_partial(tile_sum):                               # tile_sum: (1, 1)
            r = jax.lax.broadcasted_iota(jnp.int32, part_ref.shape, 0)
            c = jax.lax.broadcasted_iota(jnp.int32, part_ref.shape, 1)
            part_ref[...] = jnp.where((r == 0) & (c == 0), tile_sum, 0.0)

        if has_padding:
            last = pl.num_programs(0) - 1

            @pl.when(i == last)
            def _():
                # Only the final tile can contain BT padding rows; mask them there.
                row = i * tile_bt + jax.lax.broadcasted_iota(
                    jnp.int32, (tile_bt, 1), 0)
                valid = (row < bt_total).astype(jnp.float32)
                write_partial(jnp.sum(per_pos * valid, keepdims=True))

            @pl.when(i != last)
            def _():
                write_partial(jnp.sum(per_pos, keepdims=True))
        else:
            write_partial(jnp.sum(per_pos, keepdims=True))


def bigram_forward(idx, targets, emb_table, *, return_logits=True, tile_bt=2048,
                   vocab_padded_logits=False):
    """Pallas equivalent of BigramLanguageModel.forward(idx, targets).

    return_logits=False (with targets given): loss-only fast path, no logits HBM
        writeback — the big lever for training steps.
    tile_bt: BT tile size. 2048 is safe everywhere at the default scoped VMEM;
        4096 fits the 32 MiB limit set below on v5e/v6e/v7x for deeper overlap.
    vocab_padded_logits=True: return (B, T, 128)-lane-padded logits (cols >= V
        are zero) and skip the wrapper-side 65-wide repack.
    """
    B, T = idx.shape
    V = emb_table.shape[0]
    BT = B * T

    compute_loss = targets is not None
    emit_logits = return_logits or not compute_loss   # always emit when no loss

    v_rows = _round_up(V, 128)        # one-hot contraction dim, lane-dense
    v_cols = _round_up(V + 1, 128)    # +1 column carries the per-row logsumexp

    tile = min(tile_bt, _round_up(BT, 8))
    bt_pad = _round_up(BT, tile)
    num_tiles = bt_pad // tile
    has_padding = bt_pad != BT

    # idx (and targets) packed into one narrow int32 array: one small DMA / tile.
    ncols = 2 if compute_loss else 1
    pair = jnp.zeros((bt_pad, ncols), jnp.int32)
    pair = pair.at[:BT, 0].set(idx.reshape(BT).astype(jnp.int32))
    if compute_loss:
        pair = pair.at[:BT, 1].set(targets.reshape(BT).astype(jnp.int32))

    # Augmented, lane-padded embedding table. Hoists the logsumexp off the
    # per-position path: O(V^2) exps once instead of O(BT*V) per forward.
    emb_f32 = emb_table.astype(jnp.float32)
    emb_aug = jnp.zeros((v_rows, v_cols), jnp.float32)
    emb_aug = emb_aug.at[:V, :V].set(emb_f32)
    if compute_loss:
        row_lse = jax.scipy.special.logsumexp(emb_f32, axis=-1)    # (V,)
        emb_aug = emb_aug.at[:V, V].set(row_lse)

    kernel = functools.partial(
        _bigram_kernel, bt_total=BT, v_real=V, emit_logits=emit_logits,
        compute_loss=compute_loss, has_padding=has_padding)

    out_shapes = []
    out_specs = []
    if emit_logits:
        out_shapes.append(jax.ShapeDtypeStruct((bt_pad, v_cols), jnp.float32))
        out_specs.append(pl.BlockSpec((tile, v_cols), lambda i: (i, 0)))
    if compute_loss:
        # Per-tile partial CE sums in disjoint (8, 128) blocks -> no resident
        # accumulator -> the BT axis can be "parallel" (v7x megacore).
        out_shapes.append(jax.ShapeDtypeStruct((8 * num_tiles, 128), jnp.float32))
        out_specs.append(pl.BlockSpec((8, 128), lambda i: (i, 0)))

    outs = pl.pallas_call(
        kernel,
        out_shape=tuple(out_shapes),
        grid_spec=pltpu.PrefetchScalarGridSpec(
            num_scalar_prefetch=0,
            grid=(num_tiles,),
            in_specs=[
                pl.BlockSpec((tile, ncols), lambda i: (i, 0)),      # idx/targets
                pl.BlockSpec((v_rows, v_cols), lambda i: (0, 0)),   # table, resident
            ],
            out_specs=tuple(out_specs),
        ),
        compiler_params=pltpu.CompilerParams(
            dimension_semantics=("parallel",),
            vmem_limit_bytes=32 * 1024 * 1024,
        ),
    )(pair, emb_aug)

    if not isinstance(outs, (tuple, list)):
        outs = (outs,)

    pos = 0
    logits = None
    loss = None
    if emit_logits:
        logits_pad = outs[pos]
        pos += 1
        if vocab_padded_logits:
            logits = logits_pad[:BT].reshape(B, T, v_cols)
        else:
            logits = logits_pad[:BT, :V].reshape(B, T, V)
    if compute_loss:
        partials = outs[pos]
        loss = jnp.sum(partials) / float(BT)

    return logits, loss


if __name__ == "__main__":
    key = jax.random.PRNGKey(0)
    k_emb, k_idx, k_tgt = jax.random.split(key, 3)

    vocab_size = 65   # tiny-shakespeare-style character vocab
    B, T = 2, 8

    # nn.Embedding default init: N(0, 1)
    emb_table = jax.random.normal(k_emb, (vocab_size, vocab_size), dtype=jnp.float32)
    idx = jax.random.randint(k_idx, (B, T), 0, vocab_size, dtype=jnp.int32)
    targets = jax.random.randint(k_tgt, (B, T), 0, vocab_size, dtype=jnp.int32)

    # Reference in plain JAX (matches F.cross_entropy with mean reduction).
    ref_logits = emb_table[idx]                                      # (B, T, V)
    flat = ref_logits.reshape(B * T, vocab_size)
    tflat = targets.reshape(B * T)
    ref_lse = jax.scipy.special.logsumexp(flat, axis=-1)
    ref_loss = jnp.mean(ref_lse - flat[jnp.arange(B * T), tflat])

    # Full forward (logits + loss).
    logits, loss = bigram_forward(idx, targets, emb_table)
    jax.block_until_ready((logits, loss))
    assert logits.shape == (B, T, vocab_size)
    assert jnp.allclose(logits, ref_logits, atol=1e-5), "logits mismatch"
    assert jnp.allclose(loss, ref_loss, atol=1e-5), "loss mismatch"

    # Loss-only fast path (no logits writeback).
    no_logits, loss_only = bigram_forward(idx, targets, emb_table, return_logits=False)
    jax.block_until_ready(loss_only)
    assert no_logits is None
    assert jnp.allclose(loss_only, ref_loss, atol=1e-5), "loss-only mismatch"

    # Inference path: targets=None -> loss is None, CE math compiled out.
    logits_only, no_loss = bigram_forward(idx, None, emb_table)
    jax.block_until_ready(logits_only)
    assert no_loss is None
    assert jnp.allclose(logits_only, ref_logits, atol=1e-5), "logits-only mismatch"

    # Multi-tile + ragged BT (exercises padding mask and per-tile partial loss).
    B2, T2 = 3, 7
    idx2 = jax.random.randint(k_idx, (B2, T2), 0, vocab_size, dtype=jnp.int32)
    tgt2 = jax.random.randint(k_tgt, (B2, T2), 0, vocab_size, dtype=jnp.int32)
    logits2, loss2 = bigram_forward(idx2, tgt2, emb_table, tile_bt=8)
    jax.block_until_ready((logits2, loss2))
    ref_logits2 = emb_table[idx2]
    flat2 = ref_logits2.reshape(B2 * T2, vocab_size)
    t2 = tgt2.reshape(B2 * T2)
    ref_loss2 = jnp.mean(jax.scipy.special.logsumexp(flat2, axis=-1)
                         - flat2[jnp.arange(B2 * T2), t2])
    assert jnp.allclose(logits2, ref_logits2, atol=1e-5), "multi-tile logits mismatch"
    assert jnp.allclose(loss2, ref_loss2, atol=1e-5), "multi-tile loss mismatch"

    print("KERNEL_OK")
</pallas_src>

<mosaic_0001>
module attributes {stable_mosaic.version = 11 : i64} {
  func.func @_bigram_kernel(%arg0: i32, %arg1: memref<16x2xi32, #tpu.memory_space<vmem>>, %arg2: memref<128x128xf32, #tpu.memory_space<vmem>>, %arg3: memref<16x128xf32, #tpu.memory_space<vmem>>, %arg4: memref<8x128xf32, #tpu.memory_space<vmem>>) attributes {dimension_semantics = [#tpu.dimension_semantics<parallel>], iteration_bounds = array<i64: 1>, scalar_prefetch = 0 : i64, scratch_operands = 0 : i64, tpu.core_type = #tpu.core_type<tc>, window_params = [{transform_indices = @transform_0, window_bounds = array<i64: 16, 2>}, {pipeline_mode = #tpu.pipeline_mode<synchronous>, transform_indices = @transform_1, window_bounds = array<i64: 128, 128>}, {transform_indices = @transform_2, window_bounds = array<i64: 16, 128>}, {transform_indices = @transform_3, window_bounds = array<i64: 8, 128>}]} {
    %c0 = arith.constant 0 : index
    %c0_0 = arith.constant 0 : index
    %0 = vector.load %arg1[%c0, %c0_0] : memref<16x2xi32, #tpu.memory_space<vmem>>, vector<16x2xi32>
    %1 = vector.extract_strided_slice %0 {offsets = [0, 0], sizes = [16, 1], strides = [1, 1]} : vector<16x2xi32> to vector<16x1xi32>
    %2 = tpu.iota {dimensions = array<i32: 1>} : vector<16x128xi32>
    %3 = vector.broadcast %1 : vector<16x1xi32> to vector<16x128xi32>
    %4 = arith.cmpi eq, %2, %3 : vector<16x128xi32>
    %5 = arith.extui %4 : vector<16x128xi1> to vector<16x128xi32>
    %6 = arith.sitofp %5 : vector<16x128xi32> to vector<16x128xf32>
    %c0_1 = arith.constant 0 : index
    %c0_2 = arith.constant 0 : index
    %7 = vector.load %arg2[%c0_1, %c0_2] : memref<128x128xf32, #tpu.memory_space<vmem>>, vector<128x128xf32>
    %cst = arith.constant dense<0.000000e+00> : vector<16x128xf32>
    %8 = tpu.matmul %6, %7, %cst {dimension_numbers = #tpu.dot_dimension_numbers<[1], [0], [0], [1], [0, 0, 1, 1], [], []>} : vector<16x128xf32>, vector<128x128xf32>, vector<16x128xf32> -> vector<16x128xf32>
    %c0_3 = arith.constant 0 : index
    %c0_4 = arith.constant 0 : index
    %9 = vector.load %arg3[%c0_3, %c0_4] : memref<16x128xf32, #tpu.memory_space<vmem>>, vector<16x128xf32>
    tpu.vector_store %arg3[%c0_3, %c0_4], %8 {strides = array<i32>} : memref<16x128xf32, #tpu.memory_space<vmem>>, vector<16x128xf32>,
    %10 = vector.extract_strided_slice %0 {offsets = [0, 1], sizes = [16, 1], strides = [1, 1]} : vector<16x2xi32> to vector<16x1xi32>
    %11 = vector.extract_strided_slice %8 {offsets = [0, 65], sizes = [16, 1], strides = [1, 1]} : vector<16x128xf32> to vector<16x1xf32>
    %12 = vector.broadcast %10 : vector<16x1xi32> to vector<16x128xi32>
    %13 = arith.cmpi eq, %2, %12 : vector<16x128xi32>
    %14 = arith.extui %13 : vector<16x128xi1> to vector<16x128xi32>
    %15 = arith.sitofp %14 : vector<16x128xi32> to vector<16x128xf32>
    %16 = arith.mulf %8, %15 : vector<16x128xf32>
    %cst_5 = arith.constant dense<0.000000e+00> : vector<16xf32>
    %17 = vector.multi_reduction <add>, %16, %cst_5 [1] : vector<16x128xf32> to vector<16xf32>
    %18 = vector.shape_cast %17 : vector<16xf32> to vector<16x1xf32>
    %19 = arith.subf %11, %18 : vector<16x1xf32>
    %20 = vector.shape_cast %19 : vector<16x1xf32> to vector<1x16x1xf32>
    %cst_6 = arith.constant dense<0.000000e+00> : vector<1xf32>
    %21 = vector.multi_reduction <add>, %20, %cst_6 [1, 2] : vector<1x16x1xf32> to vector<1xf32>
    %22 = vector.shape_cast %21 : vector<1xf32> to vector<1x1x1xf32>
    %23 = vector.extract %22[0, 0, 0] : f32 from vector<1x1x1xf32>
    %24 = vector.broadcast %23 : f32 to vector<1x1xf32>
    %25 = tpu.iota {dimensions = array<i32: 0>} : vector<8x128xi32>
    %26 = tpu.iota {dimensions = array<i32: 1>} : vector<8x128xi32>
    %c0_i32 = arith.constant 0 : i32
    %27 = vector.broadcast %c0_i32 : i32 to vector<8x128xi32>
    %28 = arith.cmpi eq, %25, %27 : vector<8x128xi32>
    %c0_i32_7 = arith.constant 0 : i32
    %29 = vector.broadcast %c0_i32_7 : i32 to vector<8x128xi32>
    %30 = arith.cmpi eq, %26, %29 : vector<8x128xi32>
    %31 = arith.andi %28, %30 : vector<8x128xi1>
    %cst_8 = arith.constant 0.000000e+00 : f32
    %32 = vector.shape_cast %24 : vector<1x1xf32> to vector<1x1xf32>
    %33 = vector.broadcast %32 : vector<1x1xf32> to vector<8x128xf32>
    %34 = vector.broadcast %cst_8 : f32 to vector<8x128xf32>
    %35 = arith.select %31, %33, %34 : vector<8x128xi1>, vector<8x128xf32>
    %c0_9 = arith.constant 0 : index
    %c0_10 = arith.constant 0 : index
    %36 = vector.load %arg4[%c0_9, %c0_10] : memref<8x128xf32, #tpu.memory_space<vmem>>, vector<8x128xf32>
    tpu.vector_store %arg4[%c0_9, %c0_10], %35 {strides = array<i32>} : memref<8x128xf32, #tpu.memory_space<vmem>>, vector<8x128xf32>,
    return
  }
  func.func @transform_0(%arg0: i32) -> (i32, i32) {
    %c0_i32 = arith.constant 0 : i32
    %c0_i32_0 = arith.constant 0 : i32
    return %arg0, %c0_i32 : i32, i32
  }
  func.func @transform_1(%arg0: i32) -> (i32, i32) {
    %c0_i32 = arith.constant 0 : i32
    %c0_i32_0 = arith.constant 0 : i32
    %c0_i32_1 = arith.constant 0 : i32
    return %c0_i32, %c0_i32_0 : i32, i32
  }
  func.func @transform_2(%arg0: i32) -> (i32, i32) {
    %c0_i32 = arith.constant 0 : i32
    %c0_i32_0 = arith.constant 0 : i32
    return %arg0, %c0_i32 : i32, i32
  }
  func.func @transform_3(%arg0: i32) -> (i32, i32) {
    %c0_i32 = arith.constant 0 : i32
    %c0_i32_0 = arith.constant 0 : i32
    return %arg0, %c0_i32 : i32, i32
  }
}

</mosaic_0001>

<llo_original>
// kernel: tpu_custom_call.1
$region0: #{tpu_custom_call.1}
  #allocation0 [shape = 'u32[]', space=smem, size = 0x4, offset = 0x4, fixed_abs, tag = 'smem constant byte address 0x4 - core index']
  #allocation1 [shape = 'u32[144,128]{1,0:T(1,128)}', space=vmem, size = 0x12000, scoped, tag = 'internal scratch']
  %s0 = inlined_call_operand.vmem [shape: s32[16,2], index: 0, kind: input, shape index: {}]
  %s1 = inlined_call_operand.hbm [shape: f32[128,128], index: 1, kind: input, shape index: {}]
  %s2 = inlined_call_operand.hbm [shape: f32[16,128], index: 2, kind: output, shape index: {0}]
  %s3 = inlined_call_operand.hbm [shape: f32[8,128], index: 3, kind: output, shape index: {1}]
  %4 = xla_tuple %s2, %s3
  %s5 = sld [smem:[#allocation0]]
  $region30: #{tpu_custom_call.1} parent=0
    _
  %s7 = ssub.s32 1, %s5
  %s8 = scalar_select 0, %s7, %s5
  $region1: #{tpu_custom_call.1} parent=0
    #allocation2 [shape = 'u8[65536]{0}', space=vmem, size = 0x10000, scoped, tag = 'input window, operand 1, single buffered']
    #allocation3 [shape = 's32[1]{0}', space=sflag, size = 0x4, scoped, tag = 'scoped memory for tpu_custom_call.1']
    #allocation4 [shape = 's32[1]{0}', space=sflag, size = 0x4, scoped, tag = 'scoped memory for tpu_custom_call.1']
    #allocation5 [shape = 'u8[8192]{0}', space=vmem, size = 0x2000, scoped, tag = 'output window, operand 0, single buffered']
    #allocation6 [shape = 'u8[4096]{0}', space=vmem, size = 0x1000, scoped, tag = 'output window, operand 1, single buffered']
    #allocation7 [shape = 's32[1]{0}', space=sflag, size = 0x4, scoped, tag = 'scoped memory for tpu_custom_call.1']
    %9 = vsyncpa [#allocation3], 0
    %10 = vsyncpa [#allocation4], 0
    %11 = vsyncpa [#allocation7], 0
    // Predicated region
    $region2: #{tpu_custom_call.1} parent=1 // pred_check
      _
    $region3: #{tpu_custom_call.1} parent=1 // pred_check_branch
      %13 = sbr.rel (0) target = $region5
    $region4: #{tpu_custom_call.1} parent=1 // pred_region
      _
    $region5: #{tpu_custom_call.1} parent=1 // pred_fallthru
      _
    // Predicated region
    $region6: #{tpu_custom_call.1} parent=1 // pred_check
      _
    $region7: #{tpu_custom_call.1} parent=1 // pred_check_branch
      %15 = sbr.rel (0) target = $region9
    $region8: #{tpu_custom_call.1} parent=1 // pred_region
      %s17 = ssub.s32 2048, 2048
      %18 = vsyncadd [#allocation3], %s17
      %s19 = sshll.u32 [#allocation2], 4
      %s20 = int_to_ptr.vmem [resolvable:$true] %s19
      %25 = dma.hbm_to_vmem [thread:$0]  %s1, 2048, %s20, [#allocation3], 128, 128, 8
    $region9: #{tpu_custom_call.1} parent=1 // pred_fallthru
      _
    // Predicated region
    $region10: #{tpu_custom_call.1} parent=1 // pred_check
      _
    $region11: #{tpu_custom_call.1} parent=1 // pred_check_branch
      %27 = sbr.rel (0) target = $region13
    $region12: #{tpu_custom_call.1} parent=1 // pred_region
      %28 = dma.done [#allocation3], 2048
    $region13: #{tpu_custom_call.1} parent=1 // pred_fallthru
      _
    %v29 = vld [vmem:[%s0] sm:$0xff]
    %v30 = vld [vmem:[%s0 + $0x8] sm:$0xff]
    %v31 = vlaneseq
    %v32 = vand.u32 %v31, 127
    %33 = vset.pattern.permute.xlu0 0
    %34 = vperm.xlu0 %33, %v29
    %v35 = vpop.permute.xlu0 %34
    %36 = vset.pattern.permute.xlu0 0
    %37 = vperm.xlu0 %36, %v30
    %v38 = vpop.permute.xlu0 %37
    %vm39 = vcmp.eq.s32.totalorder %v32, %v35
    %vm40 = vcmp.eq.s32.totalorder %v32, %v38
    %v41 = vsel %vm39, 1, 0
    %v42 = vsel %vm40, 1, 0
    %v43 = vcvt.s32.f32 %v41
    %v44 = vcvt.s32.f32 %v42
    %v45 = vld [vmem:[#allocation2] sm:$0xff]
    %v46 = vld [vmem:[#allocation2 + $0x8] sm:$0xff]
    %v47 = vld [vmem:[#allocation2 + $0x10] sm:$0xff]
    %v48 = vld [vmem:[#allocation2 + $0x18] sm:$0xff]
    %v49 = vld [vmem:[#allocation2 + $0x20] sm:$0xff]
    %v50 = vld [vmem:[#allocation2 + $0x28] sm:$0xff]
    %v51 = vld [vmem:[#allocation2 + $0x30] sm:$0xff]
    %v52 = vld [vmem:[#allocation2 + $0x38] sm:$0xff]
    %v53 = vld [vmem:[#allocation2 + $0x40] sm:$0xff]
    %v54 = vld [vmem:[#allocation2 + $0x48] sm:$0xff]
    %v55 = vld [vmem:[#allocation2 + $0x50] sm:$0xff]
    %v56 = vld [vmem:[#allocation2 + $0x58] sm:$0xff]
    %v57 = vld [vmem:[#allocation2 + $0x60] sm:$0xff]
    %v58 = vld [vmem:[#allocation2 + $0x68] sm:$0xff]
    %v59 = vld [vmem:[#allocation2 + $0x70] sm:$0xff]
    %v60 = vld [vmem:[#allocation2 + $0x78] sm:$0xff]
    %61 = vmatprep.subr.mxu0 0.0
    %62 = vmatpush1.msra.mxu0 %v45
    %63 = vmatprep.subr.mxu0 0.0
    %64 = vmatpush1.msra.mxu0 %v46
    %65 = vmatprep.subr.mxu0 0.0
    %66 = vmatpush1.msra.mxu0 %v47
    %67 = vmatprep.subr.mxu0 0.0
    %68 = vmatpush1.msra.mxu0 %v48
    %69 = vmatprep.subr.mxu0 0.0
    %70 = vmatpush1.msra.mxu0 %v49
    %71 = vmatprep.subr.mxu0 0.0
    %72 = vmatpush1.msra.mxu0 %v50
    %73 = vmatprep.subr.mxu0 0.0
    %74 = vmatpush1.msra.mxu0 %v51
    %75 = vmatprep.subr.mxu0 0.0
    %76 = vmatpush1.msra.mxu0 %v52
    %77 = vmatprep.subr.mxu0 0.0
    %78 = vmatpush1.msra.mxu0 %v53
    %79 = vmatprep.subr.mxu0 0.0
    %80 = vmatpush1.msra.mxu0 %v54
    %81 = vmatprep.subr.mxu0 0.0
    %82 = vmatpush1.msra.mxu0 %v55
    %83 = vmatprep.subr.mxu0 0.0
    %84 = vmatpush1.msra.mxu0 %v56
    %85 = vmatprep.subr.mxu0 0.0
    %86 = vmatpush1.msra.mxu0 %v57
    %87 = vmatprep.subr.mxu0 0.0
    %88 = vmatpush1.msra.mxu0 %v58
    %89 = vmatprep.subr.mxu0 0.0
    %90 = vmatpush1.msra.mxu0 %v59
    %91 = vmatprep.subr.mxu0 0.0
    %92 = vmatpush1.msra.mxu0 %v60
    %93 = vmatprep.subr.mxu0 0.0
    %94 = vmatpush1.msra.mxu0 0.0
    %95 = vmatprep.subr.mxu0 0.0
    %96 = vmatpush1.msra.mxu0 0.0
    %97 = vmatprep.subr.mxu0 0.0
    %98 = vmatpush1.msra.mxu0 0.0
    %99 = vmatprep.subr.mxu0 0.0
    %100 = vmatpush1.msra.mxu0 0.0
    %101 = vmatprep.subr.mxu0 0.0
    %102 = vmatpush1.msra.mxu0 0.0
    %103 = vmatprep.subr.mxu0 0.0
    %104 = vmatpush1.msra.mxu0 0.0
    %105 = vmatprep.subr.mxu0 0.0
    %106 = vmatpush1.msra.mxu0 0.0
    %107 = vmatprep.subr.mxu0 0.0
    %108 = vmatpush1.msra.mxu0 0.0
    %109 = vmatprep.subr.mxu0 0.0
    %110 = vmatpush1.msra.mxu0 0.0
    %111 = vmatprep.subr.mxu0 0.0
    %112 = vmatpush1.msra.mxu0 0.0
    %113 = vmatprep.subr.mxu0 0.0
    %114 = vmatpush1.msra.mxu0 0.0
    %115 = vmatprep.subr.mxu0 0.0
    %116 = vmatpush1.msra.mxu0 0.0
    %117 = vmatprep.subr.mxu0 0.0
    %118 = vmatpush1.msra.mxu0 0.0
    %119 = vmatprep.subr.mxu0 0.0
    %120 = vmatpush1.msra.mxu0 0.0
    %121 = vmatprep.subr.mxu0 0.0
    %122 = vmatpush1.msra.mxu0 0.0
    %123 = vmatprep.subr.mxu0 0.0
    %124 = vmatpush1.msra.mxu0 0.0
    %125 = vmatprep.mubr.f32.mxu0 0.0
    %126 = vmatmul.mubr.f32.gmra.mrb[0].mxu0 %v43
    %v127 = vpop.f32.mrb[0].mxu0
    %v128 = vadd.f32 0.0, %v127
    %v129 = vpop.f32.mrb[0].mxu0
    %130 = vmatprep.mubr.f32.mxu0 0.0
    %131 = vmatmul.mubr.f32.gmra.mrb[0].mxu0 %v44
    %v132 = vpop.f32.mrb[0].mxu0
    %v133 = vadd.f32 0.0, %v132
    %v134 = vpop.f32.mrb[0].mxu0
    %135 = vdwg.mxu0
    %136 = vst [vmem:[#allocation5] sm:$0xff] %v128
    %137 = vst [vmem:[#allocation5 + $0x8] sm:$0xff] %v133
    %138 = vset.pattern.permute.xlu0 1
    %139 = vperm.xlu0 %138, %v29
    %v140 = vpop.permute.xlu0 %139
    %141 = vset.pattern.permute.xlu0 1
    %142 = vperm.xlu0 %141, %v30
    %v143 = vpop.permute.xlu0 %142
    %vm144 = vcmp.eq.s32.totalorder %v32, %v140
    %vm145 = vcmp.eq.s32.totalorder %v32, %v143
    %v146 = vsel %vm144, 1, 0
    %v147 = vsel %vm145, 1, 0
    %v148 = vcvt.s32.f32 %v146
    %v149 = vcvt.s32.f32 %v147
    %v150 = vmul.f32 %v128, %v148
    %v151 = vmul.f32 %v133, %v149
    %152 = vadd.xlane.f32.xlu0 %v150
    %v153 = vpop.xlane.xlu0 %152
    %154 = vadd.xlane.f32.xlu0 %v151
    %v155 = vpop.xlane.xlu0 %154
    %v156 = vsub.f32 %v128, %v153
    %v157 = vsub.f32 %v133, %v155
    %160 = vrot.lane.b32.xlu0 %v156, 63
    %v161 = vpop.permute.xlu0 %160
    %162 = vrot.lane.b32.xlu0 %v157, 63
    %v163 = vpop.permute.xlu0 %162
    %vm166 = vcmask 7168
    %v167 = vsel %vm166, %v161, 0.0
    %v168 = vsel %vm166, %v163, 0.0
    %v169 = vadd.f32 %v167, %v168
    %170 = vadd.xlane.f32.xlu0 %v169
    %v171 = vpop.xlane.xlu0 %170
    %v172 = vrot.slane %v171, 4
    %v173 = vadd.f32 %v171, %v172
    %v174 = vrot.slane %v173, 2
    %v175 = vadd.f32 %v173, %v174
    %v176 = vrot.slane %v175, 1
    %v177 = vadd.f32 %v175, %v176
    %s178 = vtos %v177
    %v179 = vlaneseq
    %v180 = vshrl.u32 %v179, 7
    %vm181 = vcmp.eq.s32.totalorder %v180, 0
    %vm182 = vcmp.eq.s32.totalorder %v32, 0
    %vm183 = vmand %vm181, %vm182
    %v184 = vstv %s178
    %v185 = vsel %vm183, %v184, 0.0
    %186 = vst [vmem:[#allocation6] sm:$0xff] %v185
    // Predicated region
    $region14: #{tpu_custom_call.1} parent=1 // pred_check
      _
    $region15: #{tpu_custom_call.1} parent=1 // pred_check_branch
      %188 = sbr.rel (0) target = $region17
    $region16: #{tpu_custom_call.1} parent=1 // pred_region
      %s190 = ssub.s32 256, 256
      %191 = vsyncadd [#allocation4], %s190
      %s192 = sshll.u32 [#allocation5], 4
      %s193 = int_to_ptr.vmem [resolvable:$true] %s192
      %198 = dma.vmem_to_hbm [thread:$0]  %s193, 256, %s2, [#allocation4], 128, 128, 8
    $region17: #{tpu_custom_call.1} parent=1 // pred_fallthru
      _
    // Predicated region
    $region18: #{tpu_custom_call.1} parent=1 // pred_check
      _
    $region19: #{tpu_custom_call.1} parent=1 // pred_check_branch
      %200 = sbr.rel (0) target = $region21
    $region20: #{tpu_custom_call.1} parent=1 // pred_region
      %s202 = ssub.s32 128, 128
      %203 = vsyncadd [#allocation7], %s202
      %s205 = sshll.u32 [#allocation6], 4
      %s206 = int_to_ptr.vmem [resolvable:$true] %s205
      %208 = dma.vmem_to_hbm [thread:$0]  %s206, 128, %s3, [#allocation7]
    $region21: #{tpu_custom_call.1} parent=1 // pred_fallthru
      _
    // Predicated region
    $region22: #{tpu_custom_call.1} parent=1 // pred_check
      _
    $region23: #{tpu_custom_call.1} parent=1 // pred_check_branch
      %210 = sbr.rel (0) target = $region25
    $region24: #{tpu_custom_call.1} parent=1 // pred_region
      %211 = dma.done [#allocation4], 256
    $region25: #{tpu_custom_call.1} parent=1 // pred_fallthru
      _
    // Predicated region
    $region26: #{tpu_custom_call.1} parent=1 // pred_check
      _
    $region27: #{tpu_custom_call.1} parent=1 // pred_check_branch
      %213 = sbr.rel (0) target = $region29
    $region28: #{tpu_custom_call.1} parent=1 // pred_region
      %214 = dma.done [#allocation7], 128
    $region29: #{tpu_custom_call.1} parent=1 // pred_fallthru
      _
    %215 = vsyncpa [#allocation3], 1
    %216 = vsyncpa [#allocation4], 1
    %217 = vsyncpa [#allocation7], 1

</llo_original>
